<compile_context>
chip_gen: v5e
topology: v5e:2x2
jax: 0.10.0
libtpu: 0.0.40
codegen_flags: <defaults>
</compile_context>

<pallas_src>
from functools import lru_cache, partial

import numpy as np
import jax
import jax.numpy as jnp
from jax.experimental import pallas as pl
from jax.experimental.pallas import tpu as pltpu


# ----------------------------------------------------------------------------
# Filter setup (deterministic, in-script). db1 / Haar analysis filters from
# pywt, flipped as in lowlevel.prep_filt_afb1d (so correlation == convolution).
# ----------------------------------------------------------------------------
_SQRT2_INV = 0.7071067811865476
_DEC_LO = np.array([_SQRT2_INV, _SQRT2_INV], dtype=np.float64)
_DEC_HI = np.array([-_SQRT2_INV, _SQRT2_INV], dtype=np.float64)
_H0 = _DEC_LO[::-1].copy()   # flipped lowpass  -> use as correlation kernel
_H1 = _DEC_HI[::-1].copy()   # flipped highpass -> use as correlation kernel


def _afb1d_matrix(n, h):
    """Stride-2, zero-padded correlation (lowlevel.afb1d, mode='zero') as an
    (n, outsize) matrix so that out = x @ G along that axis."""
    L = len(h)
    outsize = (n + L - 1) // 2                 # pywt.dwt_coeff_len(n, L, 'zero')
    p = 2 * (outsize - 1) - n + L
    pad_front = p // 2
    g = np.zeros((n, outsize), dtype=np.float32)
    for i in range(outsize):
        for k in range(L):
            r = 2 * i - pad_front + k
            if 0 <= r < n:
                g[r, i] += float(h[k])
    return g


@lru_cache(maxsize=None)
def _analysis_matrix(n):
    """(n, 2*outsize) = [lowpass | highpass] analysis bank for axis length n."""
    return np.concatenate([_afb1d_matrix(n, _H0), _afb1d_matrix(n, _H1)], axis=1)


@lru_cache(maxsize=None)
def _blockdiag_col_bank(h, b):
    """(b*h, b*2*ho) block-diagonal stack of the column analysis bank, so the
    column pass over b images is a single lane-dense MXU matmul."""
    gc = _analysis_matrix(h)                   # (h, 2*ho)
    ho2 = gc.shape[1]
    m = np.zeros((b * h, b * ho2), dtype=np.float32)
    for k in range(b):
        m[k * h:(k + 1) * h, k * ho2:(k + 1) * ho2] = gc
    return m


def _pick_block_images(nc, h, ho):
    """Images per grid step.  Priorities: (1) b*2*ho >= 128 so kernel stores are
    unmasked full-lane vst; (2) b*h >= 256 so the row-pass MXU M is full;
    (3) b divides nc; (4) avoid exactly-2-step grids (2-TensorCore parts get no
    pipelining depth from them) when lane density can be kept."""
    lane_need = max(-(-128 // (2 * ho)), 1)
    row_need = max(-(-256 // h), 1)
    want = min(max(lane_need, row_need), nc)
    divisors = [d for d in range(1, nc + 1) if nc % d == 0]
    b = max(d for d in divisors if d <= want)
    if nc // b == 2:
        smaller = [d for d in divisors if lane_need <= d < b and nc // d >= 4]
        if smaller:
            b = max(smaller)
    return b


# ----------------------------------------------------------------------------
# Pallas kernel: one DWT level for B images in two MXU matmuls.
#   x_ref   : (1, B*H, W)        B images stacked along rows
#   gr_ref  : (W, 2*Wo)          [lo | hi] row-analysis bank
#   gcbd_ref: (B*H, B*2*Ho)      block-diagonal stack of the [lo | hi] column bank
#   o_ref   : (1, 2*Wo, B*2*Ho)  packed coefficients, lane-dense last dim:
#             o[p, q] with p = wband*Wo + j, q = img*2Ho + hband*Ho + o
# ----------------------------------------------------------------------------
def _afb2d_kernel(x_ref, gr_ref, gcbd_ref, o_ref):
    rowf = jnp.dot(x_ref[0], gr_ref[...],
                   preferred_element_type=jnp.float32)        # (B*H, 2*Wo)
    out = jnp.dot(rowf.T, gcbd_ref[...],
                  preferred_element_type=jnp.float32)         # (2*Wo, B*2*Ho)
    o_ref[0] = out


def afb2d(x):
    """One DWT level (lowlevel.afb2d, mode='zero', db1). x: (N,C,H,W).
    Returns (yl: (N,C,Ho,Wo), yh: (N,C,3,Ho,Wo))."""
    n, c, h, w = x.shape
    nc = n * c
    gr_np = _analysis_matrix(w)                    # (W, 2Wo)
    gc_np = _analysis_matrix(h)                    # (H, 2Ho)
    wo = gr_np.shape[1] // 2
    ho = gc_np.shape[1] // 2

    b = _pick_block_images(nc, h, ho)
    g = nc // b
    gcbd_np = _blockdiag_col_bank(h, b)            # (b*H, b*2Ho)

    x3 = x.reshape(g, b * h, w).astype(jnp.float32)
    gr_j = jnp.asarray(gr_np, dtype=jnp.float32)
    gcbd_j = jnp.asarray(gcbd_np, dtype=jnp.float32)

    flops = (2 * nc * h * w * (2 * wo)
             + 2 * g * (2 * wo) * (b * h) * (b * 2 * ho))
    bytes_accessed = 4 * (nc * h * w + w * 2 * wo
                          + (b * h) * (b * 2 * ho)
                          + g * (2 * wo) * (b * 2 * ho))

    out = pl.pallas_call(
        _afb2d_kernel,
        out_shape=jax.ShapeDtypeStruct((g, 2 * wo, b * 2 * ho), jnp.float32),
        grid=(g,),
        in_specs=[
            pl.BlockSpec((1, b * h, w), lambda i: (i, 0, 0)),
            pl.BlockSpec((w, 2 * wo), lambda i: (0, 0)),
            pl.BlockSpec((b * h, b * 2 * ho), lambda i: (0, 0)),
        ],
        out_specs=pl.BlockSpec((1, 2 * wo, b * 2 * ho), lambda i: (i, 0, 0)),
        compiler_params=pltpu.CompilerParams(dimension_semantics=("parallel",)),
        cost_estimate=pl.CostEstimate(flops=flops, transcendentals=0,
                                      bytes_accessed=bytes_accessed),
    )(x3, gr_j, gcbd_j)

    # Unpack the tiny packed result (layout plumbing only; the heavy data never
    # makes a second HBM round-trip through a full-size q matrix).
    q = out.reshape(g, 2, wo, b, 2, ho)            # (g, wband, j, img, hband, o)
    q = q.transpose(0, 3, 4, 1, 5, 2)              # (g, img, hband, wband, o, j)
    q = q.reshape(n, c, 2, 2, ho, wo)
    yl = q[:, :, 0, 0]                             # lo_h * lo_w
    yh = jnp.stack([q[:, :, 1, 0],                 # hi_h * lo_w
                    q[:, :, 0, 1],                 # lo_h * hi_w
                    q[:, :, 1, 1]], axis=2)        # hi_h * hi_w
    return yl, yh


def dwt_forward(x, J=1):
    """DWTForward.forward equivalent. x: (N, C, H, W). Returns (yl, yh_list)."""
    ll = x
    yh = []
    for _ in range(J):
        ll, hi = afb2d(ll)
        yh.append(hi)
    return ll, yh


# ----------------------------------------------------------------------------
# Independent Haar reference (plain slicing in JAX) for one level.
# ----------------------------------------------------------------------------
def _haar_level_ref(x):
    x00 = x[..., 0::2, 0::2]
    x01 = x[..., 0::2, 1::2]
    x10 = x[..., 1::2, 0::2]
    x11 = x[..., 1::2, 1::2]
    ll = 0.5 * (x00 + x01 + x10 + x11)
    c1 = 0.5 * ((x00 + x01) - (x10 + x11))
    c2 = 0.5 * ((x00 - x01) + (x10 - x11))
    c3 = 0.5 * ((x00 - x01) - (x10 - x11))
    return ll, jnp.stack([c1, c2, c3], axis=2)


if __name__ == "__main__":
    key = jax.random.PRNGKey(0)
    N, C, H, W = 2, 4, 16, 16
    J = 2
    x = jax.random.normal(key, (N, C, H, W), dtype=jnp.float32)

    fwd = jax.jit(partial(dwt_forward, J=J))
    yl, yh = fwd(x)
    yl = jax.block_until_ready(yl)
    yh = [jax.block_until_ready(t) for t in yh]

    # Sanity check against an independent Haar reference.
    ll_ref = x
    for j in range(J):
        ll_ref, yh_ref = _haar_level_ref(ll_ref)
        np.testing.assert_allclose(np.asarray(yh[j]), np.asarray(yh_ref),
                                   rtol=1e-5, atol=1e-5)
    np.testing.assert_allclose(np.asarray(yl), np.asarray(ll_ref),
                               rtol=1e-5, atol=1e-5)

    assert yl.shape == (N, C, H // (2 ** J), W // (2 ** J))
    assert yh[0].shape == (N, C, 3, H // 2, W // 2)
    assert yh[1].shape == (N, C, 3, H // 4, W // 4)

    print("KERNEL_OK")
</pallas_src>

<mosaic_0001>
module attributes {stable_mosaic.version = 11 : i64} {
  func.func @_afb2d_kernel(%arg0: i32, %arg1: memref<1x128x16xf32, #tpu.memory_space<vmem>>, %arg2: memref<16x16xf32, #tpu.memory_space<vmem>>, %arg3: memref<128x128xf32, #tpu.memory_space<vmem>>, %arg4: memref<1x16x128xf32, #tpu.memory_space<vmem>>) attributes {dimension_semantics = [#tpu.dimension_semantics<parallel>], iteration_bounds = array<i64: 1>, scalar_prefetch = 0 : i64, scratch_operands = 0 : i64, tpu.core_type = #tpu.core_type<tc>, window_params = [{transform_indices = @transform_0, window_bounds = array<i64: 1, 128, 16>}, {pipeline_mode = #tpu.pipeline_mode<synchronous>, transform_indices = @transform_1, window_bounds = array<i64: 16, 16>}, {pipeline_mode = #tpu.pipeline_mode<synchronous>, transform_indices = @transform_2, window_bounds = array<i64: 128, 128>}, {transform_indices = @transform_3, window_bounds = array<i64: 1, 16, 128>}]} {
    %c0 = arith.constant 0 : index
    %c0_0 = arith.constant 0 : index
    %c0_1 = arith.constant 0 : index
    %0 = vector.load %arg1[%c0, %c0_0, %c0_1] : memref<1x128x16xf32, #tpu.memory_space<vmem>>, vector<1x128x16xf32>
    %1 = vector.shape_cast %0 : vector<1x128x16xf32> to vector<128x16xf32>
    %c0_2 = arith.constant 0 : index
    %c0_3 = arith.constant 0 : index
    %2 = vector.load %arg2[%c0_2, %c0_3] : memref<16x16xf32, #tpu.memory_space<vmem>>, vector<16x16xf32>
    %cst = arith.constant dense<0.000000e+00> : vector<128x16xf32>
    %3 = tpu.matmul %1, %2, %cst {dimension_numbers = #tpu.dot_dimension_numbers<[1], [0], [0], [1], [0, 0, 1, 1], [], []>} : vector<128x16xf32>, vector<16x16xf32>, vector<128x16xf32> -> vector<128x16xf32>
    %4 = tpu.transpose %3, [1, 0] : vector<128x16xf32> -> vector<16x128xf32>
    %c0_4 = arith.constant 0 : index
    %c0_5 = arith.constant 0 : index
    %5 = vector.load %arg3[%c0_4, %c0_5] : memref<128x128xf32, #tpu.memory_space<vmem>>, vector<128x128xf32>
    %cst_6 = arith.constant dense<0.000000e+00> : vector<16x128xf32>
    %6 = tpu.matmul %4, %5, %cst_6 {dimension_numbers = #tpu.dot_dimension_numbers<[1], [0], [0], [1], [0, 0, 1, 1], [], []>} : vector<16x128xf32>, vector<128x128xf32>, vector<16x128xf32> -> vector<16x128xf32>
    %c0_7 = arith.constant 0 : index
    %c0_8 = arith.constant 0 : index
    %c0_9 = arith.constant 0 : index
    %7 = vector.load %arg4[%c0_7, %c0_8, %c0_9] : memref<1x16x128xf32, #tpu.memory_space<vmem>>, vector<1x16x128xf32>
    %8 = vector.shape_cast %7 : vector<1x16x128xf32> to vector<16x128xf32>
    %9 = vector.shape_cast %6 : vector<16x128xf32> to vector<1x16x128xf32>
    tpu.vector_store %arg4[%c0_7, %c0_8, %c0_9], %9 {strides = array<i32>} : memref<1x16x128xf32, #tpu.memory_space<vmem>>, vector<1x16x128xf32>,
    return
  }
  func.func @transform_0(%arg0: i32) -> (i32, i32, i32) {
    %c0_i32 = arith.constant 0 : i32
    %c0_i32_0 = arith.constant 0 : i32
    %c0_i32_1 = arith.constant 0 : i32
    return %arg0, %c0_i32, %c0_i32_0 : i32, i32, i32
  }
  func.func @transform_1(%arg0: i32) -> (i32, i32) {
    %c0_i32 = arith.constant 0 : i32
    %c0_i32_0 = arith.constant 0 : i32
    %c0_i32_1 = arith.constant 0 : i32
    return %c0_i32, %c0_i32_0 : i32, i32
  }
  func.func @transform_2(%arg0: i32) -> (i32, i32) {
    %c0_i32 = arith.constant 0 : i32
    %c0_i32_0 = arith.constant 0 : i32
    %c0_i32_1 = arith.constant 0 : i32
    return %c0_i32, %c0_i32_0 : i32, i32
  }
  func.func @transform_3(%arg0: i32) -> (i32, i32, i32) {
    %c0_i32 = arith.constant 0 : i32
    %c0_i32_0 = arith.constant 0 : i32
    %c0_i32_1 = arith.constant 0 : i32
    return %arg0, %c0_i32, %c0_i32_0 : i32, i32, i32
  }
}

module attributes {stable_mosaic.version = 11 : i64} {
  func.func @_afb2d_kernel(%arg0: i32, %arg1: memref<1x64x8xf32, #tpu.memory_space<vmem>>, %arg2: memref<8x8xf32, #tpu.memory_space<vmem>>, %arg3: memref<64x64xf32, #tpu.memory_space<vmem>>, %arg4: memref<1x8x64xf32, #tpu.memory_space<vmem>>) attributes {dimension_semantics = [#tpu.dimension_semantics<parallel>], iteration_bounds = array<i64: 1>, scalar_prefetch = 0 : i64, scratch_operands = 0 : i64, tpu.core_type = #tpu.core_type<tc>, window_params = [{transform_indices = @transform_0, window_bounds = array<i64: 1, 64, 8>}, {pipeline_mode = #tpu.pipeline_mode<synchronous>, transform_indices = @transform_1, window_bounds = array<i64: 8, 8>}, {pipeline_mode = #tpu.pipeline_mode<synchronous>, transform_indices = @transform_2, window_bounds = array<i64: 64, 64>}, {transform_indices = @transform_3, window_bounds = array<i64: 1, 8, 64>}]} {
    %c0 = arith.constant 0 : index
    %c0_0 = arith.constant 0 : index
    %c0_1 = arith.constant 0 : index
    %0 = vector.load %arg1[%c0, %c0_0, %c0_1] : memref<1x64x8xf32, #tpu.memory_space<vmem>>, vector<1x64x8xf32>
    %1 = vector.shape_cast %0 : vector<1x64x8xf32> to vector<64x8xf32>
    %c0_2 = arith.constant 0 : index
    %c0_3 = arith.constant 0 : index
    %2 = vector.load %arg2[%c0_2, %c0_3] : memref<8x8xf32, #tpu.memory_space<vmem>>, vector<8x8xf32>
    %cst = arith.constant dense<0.000000e+00> : vector<64x8xf32>
    %3 = tpu.matmul %1, %2, %cst {dimension_numbers = #tpu.dot_dimension_numbers<[1], [0], [0], [1], [0, 0, 1, 1], [], []>} : vector<64x8xf32>, vector<8x8xf32>, vector<64x8xf32> -> vector<64x8xf32>
    %4 = tpu.transpose %3, [1, 0] : vector<64x8xf32> -> vector<8x64xf32>
    %c0_4 = arith.constant 0 : index
    %c0_5 = arith.constant 0 : index
    %5 = vector.load %arg3[%c0_4, %c0_5] : memref<64x64xf32, #tpu.memory_space<vmem>>, vector<64x64xf32>
    %cst_6 = arith.constant dense<0.000000e+00> : vector<8x64xf32>
    %6 = tpu.matmul %4, %5, %cst_6 {dimension_numbers = #tpu.dot_dimension_numbers<[1], [0], [0], [1], [0, 0, 1, 1], [], []>} : vector<8x64xf32>, vector<64x64xf32>, vector<8x64xf32> -> vector<8x64xf32>
    %c0_7 = arith.constant 0 : index
    %c0_8 = arith.constant 0 : index
    %c0_9 = arith.constant 0 : index
    %7 = vector.load %arg4[%c0_7, %c0_8, %c0_9] : memref<1x8x64xf32, #tpu.memory_space<vmem>>, vector<1x8x64xf32>
    %8 = vector.shape_cast %7 : vector<1x8x64xf32> to vector<8x64xf32>
    %9 = vector.shape_cast %6 : vector<8x64xf32> to vector<1x8x64xf32>
    tpu.vector_store %arg4[%c0_7, %c0_8, %c0_9], %9 {strides = array<i32>} : memref<1x8x64xf32, #tpu.memory_space<vmem>>, vector<1x8x64xf32>,
    return
  }
  func.func @transform_0(%arg0: i32) -> (i32, i32, i32) {
    %c0_i32 = arith.constant 0 : i32
    %c0_i32_0 = arith.constant 0 : i32
    %c0_i32_1 = arith.constant 0 : i32
    return %arg0, %c0_i32, %c0_i32_0 : i32, i32, i32
  }
  func.func @transform_1(%arg0: i32) -> (i32, i32) {
    %c0_i32 = arith.constant 0 : i32
    %c0_i32_0 = arith.constant 0 : i32
    %c0_i32_1 = arith.constant 0 : i32
    return %c0_i32, %c0_i32_0 : i32, i32
  }
  func.func @transform_2(%arg0: i32) -> (i32, i32) {
    %c0_i32 = arith.constant 0 : i32
    %c0_i32_0 = arith.constant 0 : i32
    %c0_i32_1 = arith.constant 0 : i32
    return %c0_i32, %c0_i32_0 : i32, i32
  }
  func.func @transform_3(%arg0: i32) -> (i32, i32, i32) {
    %c0_i32 = arith.constant 0 : i32
    %c0_i32_0 = arith.constant 0 : i32
    %c0_i32_1 = arith.constant 0 : i32
    return %arg0, %c0_i32, %c0_i32_0 : i32, i32, i32
  }
}

</mosaic_0001>

<llo_original>
// kernel: dwt_forward.3
$region0: #{dwt_forward.3}
  #allocation0 [shape = 'u32[]', space=smem, size = 0x4, offset = 0x4, fixed_abs, tag = 'smem constant byte address 0x4 - core index']
  #allocation1 [shape = 'u32[72,128]{1,0:T(1,128)}', space=vmem, size = 0x9000, scoped, tag = 'internal scratch']
  %s0 = inlined_call_operand.vmem [shape: f32[1,64,8], index: 0, kind: input, shape index: {}]
  %s1 = inlined_call_operand.vmem [shape: f32[8,8], index: 1, kind: input, shape index: {}]
  %s2 = inlined_call_operand.vmem [shape: f32[64,64], index: 2, kind: input, shape index: {}]
  %s3 = inlined_call_operand.vmem [shape: f32[1,8,64], index: 3, kind: output, shape index: {}]
  %s4 = sld [smem:[#allocation0]]
  $region22: #{dwt_forward.3} parent=0
    _
  %s6 = ssub.s32 1, %s4
  %s7 = scalar_select 0, %s6, %s4
  // Predicated region
  $region2: #{dwt_forward.3} parent=0 // pred_check
    _
  $region3: #{dwt_forward.3} parent=0 // pred_check_branch
    %9 = sbr.rel (0) target = $region5
  $region4: #{dwt_forward.3} parent=0 // pred_region
    _
  $region5: #{dwt_forward.3} parent=0 // pred_fallthru
    _
  // Predicated region
  $region6: #{dwt_forward.3} parent=0 // pred_check
    _
  $region7: #{dwt_forward.3} parent=0 // pred_check_branch
    %11 = sbr.rel (0) target = $region9
  $region8: #{dwt_forward.3} parent=0 // pred_region
    _
  $region9: #{dwt_forward.3} parent=0 // pred_fallthru
    _
  // Predicated region
  $region10: #{dwt_forward.3} parent=0 // pred_check
    _
  $region11: #{dwt_forward.3} parent=0 // pred_check_branch
    %13 = sbr.rel (0) target = $region13
  $region12: #{dwt_forward.3} parent=0 // pred_region
    _
  $region13: #{dwt_forward.3} parent=0 // pred_fallthru
    _
  %v14 = vld [vmem:[%s0] sm:$0xff]
  %v15 = vld [vmem:[%s0 + $0x8] sm:$0xff]
  %v16 = vld [vmem:[%s0 + $0x10] sm:$0xff]
  %v17 = vld [vmem:[%s0 + $0x18] sm:$0xff]
  %v18 = vld [vmem:[%s0 + $0x20] sm:$0xff]
  %v19 = vld [vmem:[%s0 + $0x28] sm:$0xff]
  %v20 = vld [vmem:[%s0 + $0x30] sm:$0xff]
  %v21 = vld [vmem:[%s0 + $0x38] sm:$0xff]
  %v22 = vld [vmem:[%s1] sm:$0xff]
  %vm23 = vcmask 64512
  %v25 = vsel %vm23, %v14, 0
  %v28 = vsel %vm23, %v15, 0
  %v31 = vsel %vm23, %v16, 0
  %v34 = vsel %vm23, %v17, 0
  %v37 = vsel %vm23, %v18, 0
  %v40 = vsel %vm23, %v19, 0
  %v43 = vsel %vm23, %v20, 0
  %v46 = vsel %vm23, %v21, 0
  %48 = vmatpush.msra.mxu0 0.0
  %49 = vmatpush.msra.mxu0 0.0
  %50 = vmatpush.msra.mxu0 0.0
  %51 = vmatpush.msra.mxu0 0.0
  %52 = vmatpush.msra.mxu0 0.0
  %53 = vmatpush.msra.mxu0 0.0
  %54 = vmatpush.msra.mxu0 0.0
  %55 = vmatpush.msra.mxu0 0.0
  %56 = vmatpush.msra.mxu0 0.0
  %57 = vmatpush.msra.mxu0 0.0
  %58 = vmatpush.msra.mxu0 0.0
  %59 = vmatpush.msra.mxu0 0.0
  %60 = vmatpush.msra.mxu0 0.0
  %61 = vmatpush.msra.mxu0 0.0
  %62 = vmatpush.msra.mxu0 0.0
  %63 = vmatpush.msra.mxu0 %v22
  %64 = vmatmul.f32.gmra.mxu0 %v25
  %v65 = vpop.f32.mrf.mxu0
  %v66 = vadd.f32 0.0, %v65
  %67 = vmatmul.f32.gmra.mxu0 %v28
  %v68 = vpop.f32.mrf.mxu0
  %v69 = vadd.f32 0.0, %v68
  %70 = vmatmul.f32.gmra.mxu0 %v31
  %v71 = vpop.f32.mrf.mxu0
  %v72 = vadd.f32 0.0, %v71
  %73 = vmatmul.f32.gmra.mxu0 %v34
  %v74 = vpop.f32.mrf.mxu0
  %v75 = vadd.f32 0.0, %v74
  %76 = vmatmul.f32.gmra.mxu0 %v37
  %v77 = vpop.f32.mrf.mxu0
  %v78 = vadd.f32 0.0, %v77
  %79 = vmatmul.f32.gmra.mxu0 %v40
  %v80 = vpop.f32.mrf.mxu0
  %v81 = vadd.f32 0.0, %v80
  %82 = vmatmul.f32.gmra.mxu0 %v43
  %v83 = vpop.f32.mrf.mxu0
  %v84 = vadd.f32 0.0, %v83
  %85 = vmatmul.f32.gmra.mxu0 %v46
  %v86 = vpop.f32.mrf.mxu0
  %v87 = vadd.f32 0.0, %v86
  %88 = vdwg.mxu0
  %89 = vxpose.xlu0.b32.start [1/16] %v66, 128
  %90 = vxpose.xlu0.b32.cont [2/16] %v69, 128
  %91 = vxpose.xlu0.b32.cont [3/16] %v72, 128
  %92 = vxpose.xlu0.b32.cont [4/16] %v75, 128
  %93 = vxpose.xlu0.b32.cont [5/16] %v78, 128
  %94 = vxpose.xlu0.b32.cont [6/16] %v81, 128
  %95 = vxpose.xlu0.b32.cont [7/16] %v84, 128
  %96 = vxpose.xlu0.b32.cont [8/16] %v87, 128
  %97 = vxpose.xlu0.b32.cont [9/16] 0.0, 128
  %98 = vxpose.xlu0.b32.cont [10/16] 0.0, 128
  %99 = vxpose.xlu0.b32.cont [11/16] 0.0, 128
  %100 = vxpose.xlu0.b32.cont [12/16] 0.0, 128
  %101 = vxpose.xlu0.b32.cont [13/16] 0.0, 128
  %102 = vxpose.xlu0.b32.cont [14/16] 0.0, 128
  %103 = vxpose.xlu0.b32.cont [15/16] 0.0, 128
  %104 = vxpose.xlu0.b32.end [16/16] 0.0, 128
  %v105 = vpop.trf.xlu0
  %v106 = vpop.trf.xlu0
  %v107 = vpop.trf.xlu0
  %v108 = vpop.trf.xlu0
  %v109 = vpop.trf.xlu0
  %v110 = vpop.trf.xlu0
  %v111 = vpop.trf.xlu0
  %v112 = vpop.trf.xlu0
  %v113 = vpop.trf.xlu0
  %v114 = vpop.trf.xlu0
  %v115 = vpop.trf.xlu0
  %v116 = vpop.trf.xlu0
  %v117 = vpop.trf.xlu0
  %v118 = vpop.trf.xlu0
  %v119 = vpop.trf.xlu0
  %v120 = vpop.trf.xlu0
  %v121 = vld [vmem:[%s2] sm:$0xff]
  %v122 = vld [vmem:[%s2 + $0x8] sm:$0xff]
  %v123 = vld [vmem:[%s2 + $0x10] sm:$0xff]
  %v124 = vld [vmem:[%s2 + $0x18] sm:$0xff]
  %v125 = vld [vmem:[%s2 + $0x20] sm:$0xff]
  %v126 = vld [vmem:[%s2 + $0x28] sm:$0xff]
  %v127 = vld [vmem:[%s2 + $0x30] sm:$0xff]
  %v128 = vld [vmem:[%s2 + $0x38] sm:$0xff]
  %vm129 = vcmask 523264
  %v131 = vsel %vm129, %v105, 0
  %133 = vmatpush.msra.mxu0 0.0
  %134 = vmatpush.msra.mxu0 0.0
  %135 = vmatpush.msra.mxu0 0.0
  %136 = vmatpush.msra.mxu0 0.0
  %137 = vmatpush.msra.mxu0 0.0
  %138 = vmatpush.msra.mxu0 0.0
  %139 = vmatpush.msra.mxu0 0.0
  %140 = vmatpush.msra.mxu0 0.0
  %141 = vmatpush.msra.mxu0 %v128
  %142 = vmatpush.msra.mxu0 %v127
  %143 = vmatpush.msra.mxu0 %v126
  %144 = vmatpush.msra.mxu0 %v125
  %145 = vmatpush.msra.mxu0 %v124
  %146 = vmatpush.msra.mxu0 %v123
  %147 = vmatpush.msra.mxu0 %v122
  %148 = vmatpush.msra.mxu0 %v121
  %149 = vmatmul.f32.gmra.mxu0 %v131
  %v150 = vpop.f32.mrf.mxu0
  %v151 = vadd.f32 0.0, %v150
  %152 = vdwg.mxu0
  %153 = vst.msk [vmem:[%s3] sm:$0xff] %vm129, %v151
  // Predicated region
  $region14: #{dwt_forward.3} parent=0 // pred_check
    _
  $region15: #{dwt_forward.3} parent=0 // pred_check_branch
    %155 = sbr.rel (0) target = $region17
  $region16: #{dwt_forward.3} parent=0 // pred_region
    _
  $region17: #{dwt_forward.3} parent=0 // pred_fallthru
    _
  // Predicated region
  $region18: #{dwt_forward.3} parent=0 // pred_check
    _
  $region19: #{dwt_forward.3} parent=0 // pred_check_branch
    %157 = sbr.rel (0) target = $region21
  $region20: #{dwt_forward.3} parent=0 // pred_region
    _
  $region21: #{dwt_forward.3} parent=0 // pred_fallthru
    _

// kernel: dwt_forward.2
$region0: #{dwt_forward.2}
  #allocation0 [shape = 'u32[]', space=smem, size = 0x4, offset = 0x4, fixed_abs, tag = 'smem constant byte address 0x4 - core index']
  #allocation1 [shape = 'u32[72,128]{1,0:T(1,128)}', space=vmem, size = 0x9000, scoped, tag = 'internal scratch']
  %s0 = inlined_call_operand.hbm [shape: f32[1,128,16], index: 0, kind: input, shape index: {}]
  %s1 = inlined_call_operand.hbm [shape: f32[16,16], index: 1, kind: input, shape index: {}]
  %s2 = inlined_call_operand.hbm [shape: f32[128,128], index: 2, kind: input, shape index: {}]
  %s3 = inlined_call_operand.vmem [shape: f32[1,16,128], index: 3, kind: output, shape index: {}]
  %s4 = sld [smem:[#allocation0]]
  $region34: #{dwt_forward.2} parent=0
    _
  %s6 = ssub.s32 1, %s4
  %s7 = scalar_select 0, %s6, %s4
  $region1: #{dwt_forward.2} parent=0
    #allocation2 [shape = 'u8[65536]{0}', space=vmem, size = 0x10000, scoped, tag = 'input window, operand 0, single buffered']
    #allocation3 [shape = 's32[1]{0}', space=sflag, size = 0x4, scoped, tag = 'scoped memory for dwt_forward.2']
    #allocation4 [shape = 'u8[8192]{0}', space=vmem, size = 0x2000, scoped, tag = 'input window, operand 1, single buffered']
    #allocation5 [shape = 's32[1]{0}', space=sflag, size = 0x4, scoped, tag = 'scoped memory for dwt_forward.2']
    #allocation6 [shape = 'u8[65536]{0}', space=vmem, size = 0x10000, scoped, tag = 'input window, operand 2, single buffered']
    %8 = vsyncpa [#allocation3], 0
    %9 = vsyncpa [#allocation5], 0
    // Predicated region
    $region2: #{dwt_forward.2} parent=1 // pred_check
      _
    $region3: #{dwt_forward.2} parent=1 // pred_check_branch
      %11 = sbr.rel (0) target = $region5
    $region4: #{dwt_forward.2} parent=1 // pred_region
      %13 = vsyncadd [#allocation3], 0
      %s14 = sshll.u32 %s0, 4
      %s15 = int_to_ptr.hbm [resolvable:$true] %s14
      %s16 = sshll.u32 [#allocation2], 4
      %s17 = int_to_ptr.vmem [resolvable:$true] %s16
      %22 = dma.hbm_to_vmem [thread:$0]  %s15, 2048, %s17, [#allocation3], 128, 128, 8
    $region5: #{dwt_forward.2} parent=1 // pred_fallthru
      _
    // Predicated region
    $region6: #{dwt_forward.2} parent=1 // pred_check
      _
    $region7: #{dwt_forward.2} parent=1 // pred_check_branch
      %24 = sbr.rel (0) target = $region9
    $region8: #{dwt_forward.2} parent=1 // pred_region
      %26 = vsyncadd [#allocation5], 0
      %s27 = sshll.u32 %s1, 4
      %s28 = int_to_ptr.hbm [resolvable:$true] %s27
      %s29 = sshll.u32 [#allocation4], 4
      %s30 = int_to_ptr.vmem [resolvable:$true] %s29
      %35 = dma.hbm_to_vmem [thread:$0]  %s28, 256, %s30, [#allocation5], 128, 128, 8
    $region9: #{dwt_forward.2} parent=1 // pred_fallthru
      _
    // Predicated region
    $region10: #{dwt_forward.2} parent=1 // pred_check
      _
    $region11: #{dwt_forward.2} parent=1 // pred_check_branch
      %37 = sbr.rel (0) target = $region13
    $region12: #{dwt_forward.2} parent=1 // pred_region
      %39 = vsyncadd [#allocation5], 0
      %s40 = sshll.u32 %s2, 4
      %s41 = int_to_ptr.hbm [resolvable:$true] %s40
      %s42 = sshll.u32 [#allocation6], 4
      %s43 = int_to_ptr.vmem [resolvable:$true] %s42
      %48 = dma.hbm_to_vmem [thread:$0]  %s41, 2048, %s43, [#allocation5], 128, 128, 8
    $region13: #{dwt_forward.2} parent=1 // pred_fallthru
      _
    // Predicated region
    $region14: #{dwt_forward.2} parent=1 // pred_check
      _
    $region15: #{dwt_forward.2} parent=1 // pred_check_branch
      %50 = sbr.rel (0) target = $region17
    $region16: #{dwt_forward.2} parent=1 // pred_region
      %52 = dma.done [#allocation3], 2048
    $region17: #{dwt_forward.2} parent=1 // pred_fallthru
      _
    // Predicated region
    $region18: #{dwt_forward.2} parent=1 // pred_check
      _
    $region19: #{dwt_forward.2} parent=1 // pred_check_branch
      %54 = sbr.rel (0) target = $region21
    $region20: #{dwt_forward.2} parent=1 // pred_region
      %56 = dma.done [#allocation5], 256
    $region21: #{dwt_forward.2} parent=1 // pred_fallthru
      _
    // Predicated region
    $region22: #{dwt_forward.2} parent=1 // pred_check
      _
    $region23: #{dwt_forward.2} parent=1 // pred_check_branch
      %58 = sbr.rel (0) target = $region25
    $region24: #{dwt_forward.2} parent=1 // pred_region
      %60 = dma.done [#allocation5], 2048
    $region25: #{dwt_forward.2} parent=1 // pred_fallthru
      _
    %v61 = vld [vmem:[#allocation2] sm:$0xff]
    %v62 = vld [vmem:[#allocation2 + $0x8] sm:$0xff]
    %v63 = vld [vmem:[#allocation2 + $0x10] sm:$0xff]
    %v64 = vld [vmem:[#allocation2 + $0x18] sm:$0xff]
    %v65 = vld [vmem:[#allocation2 + $0x20] sm:$0xff]
    %v66 = vld [vmem:[#allocation2 + $0x28] sm:$0xff]
    %v67 = vld [vmem:[#allocation2 + $0x30] sm:$0xff]
    %v68 = vld [vmem:[#allocation2 + $0x38] sm:$0xff]
    %v69 = vld [vmem:[#allocation2 + $0x40] sm:$0xff]
    %v70 = vld [vmem:[#allocation2 + $0x48] sm:$0xff]
    %v71 = vld [vmem:[#allocation2 + $0x50] sm:$0xff]
    %v72 = vld [vmem:[#allocation2 + $0x58] sm:$0xff]
    %v73 = vld [vmem:[#allocation2 + $0x60] sm:$0xff]
    %v74 = vld [vmem:[#allocation2 + $0x68] sm:$0xff]
    %v75 = vld [vmem:[#allocation2 + $0x70] sm:$0xff]
    %v76 = vld [vmem:[#allocation2 + $0x78] sm:$0xff]
    %v77 = vld [vmem:[#allocation4] sm:$0xff]
    %v78 = vld [vmem:[#allocation4 + $0x8] sm:$0xff]
    %vm79 = vcmask 130048
    %v81 = vsel %vm79, %v61, 0
    %v84 = vsel %vm79, %v62, 0
    %v87 = vsel %vm79, %v63, 0
    %v90 = vsel %vm79, %v64, 0
    %v93 = vsel %vm79, %v65, 0
    %v96 = vsel %vm79, %v66, 0
    %v99 = vsel %vm79, %v67, 0
    %v102 = vsel %vm79, %v68, 0
    %v105 = vsel %vm79, %v69, 0
    %v108 = vsel %vm79, %v70, 0
    %v111 = vsel %vm79, %v71, 0
    %v114 = vsel %vm79, %v72, 0
    %v117 = vsel %vm79, %v73, 0
    %v120 = vsel %vm79, %v74, 0
    %v123 = vsel %vm79, %v75, 0
    %v126 = vsel %vm79, %v76, 0
    %128 = vmatpush.msra.mxu0 0.0
    %129 = vmatpush.msra.mxu0 0.0
    %130 = vmatpush.msra.mxu0 0.0
    %131 = vmatpush.msra.mxu0 0.0
    %132 = vmatpush.msra.mxu0 0.0
    %133 = vmatpush.msra.mxu0 0.0
    %134 = vmatpush.msra.mxu0 0.0
    %135 = vmatpush.msra.mxu0 0.0
    %136 = vmatpush.msra.mxu0 0.0
    %137 = vmatpush.msra.mxu0 0.0
    %138 = vmatpush.msra.mxu0 0.0
    %139 = vmatpush.msra.mxu0 0.0
    %140 = vmatpush.msra.mxu0 0.0
    %141 = vmatpush.msra.mxu0 0.0
    %142 = vmatpush.msra.mxu0 %v78
    %143 = vmatpush.msra.mxu0 %v77
    %144 = vmatmul.f32.gmra.mxu0 %v81
    %v145 = vpop.f32.mrf.mxu0
    %v146 = vadd.f32 0.0, %v145
    %147 = vmatmul.f32.gmra.mxu0 %v84
    %v148 = vpop.f32.mrf.mxu0
    %v149 = vadd.f32 0.0, %v148
    %150 = vmatmul.f32.gmra.mxu0 %v87
    %v151 = vpop.f32.mrf.mxu0
    %v152 = vadd.f32 0.0, %v151
    %153 = vmatmul.f32.gmra.mxu0 %v90
    %v154 = vpop.f32.mrf.mxu0
    %v155 = vadd.f32 0.0, %v154
    %156 = vmatmul.f32.gmra.mxu0 %v93
    %v157 = vpop.f32.mrf.mxu0
    %v158 = vadd.f32 0.0, %v157
    %159 = vmatmul.f32.gmra.mxu0 %v96
    %v160 = vpop.f32.mrf.mxu0
    %v161 = vadd.f32 0.0, %v160
    %162 = vmatmul.f32.gmra.mxu0 %v99
    %v163 = vpop.f32.mrf.mxu0
    %v164 = vadd.f32 0.0, %v163
    %165 = vmatmul.f32.gmra.mxu0 %v102
    %v166 = vpop.f32.mrf.mxu0
    %v167 = vadd.f32 0.0, %v166
    %168 = vmatmul.f32.gmra.mxu0 %v105
    %v169 = vpop.f32.mrf.mxu0
    %v170 = vadd.f32 0.0, %v169
    %171 = vmatmul.f32.gmra.mxu0 %v108
    %v172 = vpop.f32.mrf.mxu0
    %v173 = vadd.f32 0.0, %v172
    %174 = vmatmul.f32.gmra.mxu0 %v111
    %v175 = vpop.f32.mrf.mxu0
    %v176 = vadd.f32 0.0, %v175
    %177 = vmatmul.f32.gmra.mxu0 %v114
    %v178 = vpop.f32.mrf.mxu0
    %v179 = vadd.f32 0.0, %v178
    %180 = vmatmul.f32.gmra.mxu0 %v117
    %v181 = vpop.f32.mrf.mxu0
    %v182 = vadd.f32 0.0, %v181
    %183 = vmatmul.f32.gmra.mxu0 %v120
    %v184 = vpop.f32.mrf.mxu0
    %v185 = vadd.f32 0.0, %v184
    %186 = vmatmul.f32.gmra.mxu0 %v123
    %v187 = vpop.f32.mrf.mxu0
    %v188 = vadd.f32 0.0, %v187
    %189 = vmatmul.f32.gmra.mxu0 %v126
    %v190 = vpop.f32.mrf.mxu0
    %v191 = vadd.f32 0.0, %v190
    %192 = vdwg.mxu0
    %193 = vxpose.xlu0.b32.start [1/16] %v146, 128
    %194 = vxpose.xlu0.b32.cont [2/16] %v149, 128
    %195 = vxpose.xlu0.b32.cont [3/16] %v152, 128
    %196 = vxpose.xlu0.b32.cont [4/16] %v155, 128
    %197 = vxpose.xlu0.b32.cont [5/16] %v158, 128
    %198 = vxpose.xlu0.b32.cont [6/16] %v161, 128
    %199 = vxpose.xlu0.b32.cont [7/16] %v164, 128
    %200 = vxpose.xlu0.b32.cont [8/16] %v167, 128
    %201 = vxpose.xlu0.b32.cont [9/16] %v170, 128
    %202 = vxpose.xlu0.b32.cont [10/16] %v173, 128
    %203 = vxpose.xlu0.b32.cont [11/16] %v176, 128
    %204 = vxpose.xlu0.b32.cont [12/16] %v179, 128
    %205 = vxpose.xlu0.b32.cont [13/16] %v182, 128
    %206 = vxpose.xlu0.b32.cont [14/16] %v185, 128
    %207 = vxpose.xlu0.b32.cont [15/16] %v188, 128
    %208 = vxpose.xlu0.b32.end [16/16] %v191, 128
    %v209 = vpop.trf.xlu0
    %v210 = vpop.trf.xlu0
    %v211 = vpop.trf.xlu0
    %v212 = vpop.trf.xlu0
    %v213 = vpop.trf.xlu0
    %v214 = vpop.trf.xlu0
    %v215 = vpop.trf.xlu0
    %v216 = vpop.trf.xlu0
    %v217 = vpop.trf.xlu0
    %v218 = vpop.trf.xlu0
    %v219 = vpop.trf.xlu0
    %v220 = vpop.trf.xlu0
    %v221 = vpop.trf.xlu0
    %v222 = vpop.trf.xlu0
    %v223 = vpop.trf.xlu0
    %v224 = vpop.trf.xlu0
    %v225 = vld [vmem:[#allocation6] sm:$0xff]
    %v226 = vld [vmem:[#allocation6 + $0x8] sm:$0xff]
    %v227 = vld [vmem:[#allocation6 + $0x10] sm:$0xff]
    %v228 = vld [vmem:[#allocation6 + $0x18] sm:$0xff]
    %v229 = vld [vmem:[#allocation6 + $0x20] sm:$0xff]
    %v230 = vld [vmem:[#allocation6 + $0x28] sm:$0xff]
    %v231 = vld [vmem:[#allocation6 + $0x30] sm:$0xff]
    %v232 = vld [vmem:[#allocation6 + $0x38] sm:$0xff]
    %v233 = vld [vmem:[#allocation6 + $0x40] sm:$0xff]
    %v234 = vld [vmem:[#allocation6 + $0x48] sm:$0xff]
    %v235 = vld [vmem:[#allocation6 + $0x50] sm:$0xff]
    %v236 = vld [vmem:[#allocation6 + $0x58] sm:$0xff]
    %v237 = vld [vmem:[#allocation6 + $0x60] sm:$0xff]
    %v238 = vld [vmem:[#allocation6 + $0x68] sm:$0xff]
    %v239 = vld [vmem:[#allocation6 + $0x70] sm:$0xff]
    %v240 = vld [vmem:[#allocation6 + $0x78] sm:$0xff]
    %241 = vmatpush.msra.mxu0 %v240
    %242 = vmatpush.msra.mxu0 %v239
    %243 = vmatpush.msra.mxu0 %v238
    %244 = vmatpush.msra.mxu0 %v237
    %245 = vmatpush.msra.mxu0 %v236
    %246 = vmatpush.msra.mxu0 %v235
    %247 = vmatpush.msra.mxu0 %v234
    %248 = vmatpush.msra.mxu0 %v233
    %249 = vmatpush.msra.mxu0 %v232
    %250 = vmatpush.msra.mxu0 %v231
    %251 = vmatpush.msra.mxu0 %v230
    %252 = vmatpush.msra.mxu0 %v229
    %253 = vmatpush.msra.mxu0 %v228
    %254 = vmatpush.msra.mxu0 %v227
    %255 = vmatpush.msra.mxu0 %v226
    %256 = vmatpush.msra.mxu0 %v225
    %257 = vmatmul.f32.gmra.mxu0 %v209
    %v258 = vpop.f32.mrf.mxu0
    %v259 = vadd.f32 0.0, %v258
    %260 = vmatmul.f32.gmra.mxu0 %v210
    %v261 = vpop.f32.mrf.mxu0
    %v262 = vadd.f32 0.0, %v261
    %263 = vdwg.mxu0
    %264 = vst [vmem:[%s3] sm:$0xff] %v259
    %265 = vst [vmem:[%s3 + $0x8] sm:$0xff] %v262
    // Predicated region
    $region26: #{dwt_forward.2} parent=1 // pred_check
      _
    $region27: #{dwt_forward.2} parent=1 // pred_check_branch
      %267 = sbr.rel (0) target = $region29
    $region28: #{dwt_forward.2} parent=1 // pred_region
      _
    $region29: #{dwt_forward.2} parent=1 // pred_fallthru
      _
    // Predicated region
    $region30: #{dwt_forward.2} parent=1 // pred_check
      _
    $region31: #{dwt_forward.2} parent=1 // pred_check_branch
      %269 = sbr.rel (0) target = $region33
    $region32: #{dwt_forward.2} parent=1 // pred_region
      _
    $region33: #{dwt_forward.2} parent=1 // pred_fallthru
      _
    %270 = vsyncpa [#allocation3], 1
    %271 = vsyncpa [#allocation5], 1

</llo_original>
